<compile_context>
chip_gen: v7x
topology: tpu7x:2x2x1
jax: 0.10.0
libtpu: 0.0.40
codegen_flags: <defaults>
</compile_context>

<pallas_src>
import math

import jax
import jax.numpy as jnp
from jax import lax
from jax.experimental import pallas as pl
from jax.experimental.pallas import tpu as pltpu


def _round_up(n, m):
    return ((n + m - 1) // m) * m


def _lora_kernel(x_ref, wd_ref, wu_ref, act_ref, o_ref):
    x = x_ref[...]                                                  # (tm, D)
    # down.weight has layout (rank, D): contract x dim 1 with wd dim 1.
    z = lax.dot_general(x, wd_ref[...], (((1,), (1,)), ((), ())),
                        preferred_element_type=jnp.float32)         # (tm, rank)
    # up.weight has layout (D, rank): contract z dim 1 with wu dim 1.
    y = lax.dot_general(z, wu_ref[...], (((1,), (1,)), ((), ())),
                        preferred_element_type=jnp.float32)         # (tm, D)
    mask = act_ref[...] != 0                                        # (tm, 1)
    o_ref[...] = jnp.where(mask, y, x.astype(jnp.float32)).astype(o_ref.dtype)


def lora_forward(x, w_down, w_up, active=None, *, tm=None):
    """
    x:       (..., D)
    w_down:  (rank, D)        -- PyTorch nn.Linear(model_dim, rank).weight
    w_up:    (adapter, rank)  -- PyTorch nn.Linear(rank, adapter_size).weight
    active:  (...,) bool mask or None
    """
    if active is None:
        # Matches the PyTorch module: identity when no mask is supplied.
        return x

    orig_shape = x.shape
    D = orig_shape[-1]
    rank, d_in = w_down.shape
    adapter_size, r2 = w_up.shape
    assert d_in == D, "down.weight in_features must equal model_dim"
    assert r2 == rank, "up.weight in_features must equal rank"
    assert adapter_size == D, (
        "torch.where broadcast in the reference requires adapter_size == model_dim")

    M = int(math.prod(orig_shape[:-1]))
    dtype_bytes = jnp.dtype(x.dtype).itemsize

    # ---- Choose the row tile: as big as fits a conservative VMEM budget.
    # Weight blocks are grid-invariant but still double-buffered by default,
    # so count them twice; x-in and y-out are each double-buffered too.
    weight_bytes = 2 * 2 * rank * D * dtype_bytes
    vmem_budget = 48 * 1024 * 1024          # conservative for v7x (64 MiB phys)
    tm_sel = 512 if tm is None else int(tm)
    while tm_sel > 8 and (4 * tm_sel * D * dtype_bytes + weight_bytes) > vmem_budget:
        tm_sel //= 2
    # Never bigger than the padded row count.
    tm_sel = min(tm_sel, _round_up(M, 8))
    # Prefer >= 2 grid steps when rows allow (v7x has 2 TensorCores/chip).
    while tm_sel > 8 and pl.cdiv(M, tm_sel) < 2 and M > 2 * 8:
        tm_sel //= 2
    tm_sel = max(8, (tm_sel // 8) * 8)

    M_pad = _round_up(M, tm_sel)

    x2 = x.reshape(M, D)
    act2 = active.reshape(M, 1).astype(jnp.int32)
    if M_pad != M:
        x2 = jnp.pad(x2, ((0, M_pad - M), (0, 0)))
        act2 = jnp.pad(act2, ((0, M_pad - M), (0, 0)))   # padded rows inactive

    grid = (M_pad // tm_sel,)

    # Explicit scoped-VMEM limit so the big tile compiles on all generations.
    vmem_need = (4 * tm_sel * D * dtype_bytes      # x in + y out, double-buffered
                 + weight_bytes                    # both weights, double-buffered
                 + 4 * tm_sel * 4)                 # mask blocks
    vmem_limit = int(min(max(int(vmem_need * 1.3), 16 * 1024 * 1024),
                         64 * 1024 * 1024))

    out = pl.pallas_call(
        _lora_kernel,
        out_shape=jax.ShapeDtypeStruct((M_pad, D), x.dtype),
        grid_spec=pltpu.PrefetchScalarGridSpec(
            num_scalar_prefetch=0,
            grid=grid,
            in_specs=[
                pl.BlockSpec((tm_sel, D), lambda i: (i, 0)),   # x rows
                pl.BlockSpec((rank, D), lambda i: (0, 0)),     # down.weight (native layout)
                pl.BlockSpec((D, rank), lambda i: (0, 0)),     # up.weight   (native layout)
                pl.BlockSpec((tm_sel, 1), lambda i: (i, 0)),   # active mask
            ],
            out_specs=pl.BlockSpec((tm_sel, D), lambda i: (i, 0)),
        ),
        compiler_params=pltpu.CompilerParams(
            dimension_semantics=("parallel",),
            vmem_limit_bytes=vmem_limit),
    )(x2, w_down, w_up, act2)

    if M_pad != M:
        out = out[:M]
    return out.reshape(orig_shape)


if __name__ == "__main__":
    # Small shapes consistent with the module's forward.
    batch, seq, model_dim, rank = 2, 8, 32, 4

    key = jax.random.PRNGKey(0)
    kx, kd, ku, ka = jax.random.split(key, 4)

    x = jax.random.normal(kx, (batch, seq, model_dim), dtype=jnp.float32)

    # Deterministic parameter init (Kaiming-uniform-like bounds, as nn.Linear).
    bound_d = 1.0 / math.sqrt(model_dim)
    bound_u = 1.0 / math.sqrt(rank)
    w_down = jax.random.uniform(kd, (rank, model_dim), jnp.float32,
                                -bound_d, bound_d)            # down.weight
    w_up = jax.random.uniform(ku, (model_dim, rank), jnp.float32,
                              -bound_u, bound_u)              # up.weight

    active = jax.random.bernoulli(ka, 0.5, (batch, seq))      # bool mask

    out = lora_forward(x, w_down, w_up, active)
    out = jax.block_until_ready(out)

    # Reference check in plain JAX (mirrors the PyTorch forward exactly).
    y_ref = jnp.where(active[..., None], (x @ w_down.T) @ w_up.T, x)
    assert jnp.allclose(out, y_ref, atol=1e-5, rtol=1e-5), "mismatch vs reference"

    # Non-divisible row count exercises the cdiv + padding path.
    x_odd = jax.random.normal(kx, (3, 5, model_dim), dtype=jnp.float32)
    act_odd = jax.random.bernoulli(ka, 0.5, (3, 5))
    out_odd = jax.block_until_ready(lora_forward(x_odd, w_down, w_up, act_odd))
    ref_odd = jnp.where(act_odd[..., None], (x_odd @ w_down.T) @ w_up.T, x_odd)
    assert jnp.allclose(out_odd, ref_odd, atol=1e-5, rtol=1e-5), "tail mismatch"

    # active=None path (identity).
    out_none = lora_forward(x, w_down, w_up, None)
    assert jnp.allclose(out_none, x)

    print("KERNEL_OK")
</pallas_src>

<mosaic_0001>
module attributes {stable_mosaic.version = 11 : i64} {
  func.func @_lora_kernel(%arg0: i32, %arg1: memref<16x32xf32, #tpu.memory_space<vmem>>, %arg2: memref<4x32xf32, #tpu.memory_space<vmem>>, %arg3: memref<32x4xf32, #tpu.memory_space<vmem>>, %arg4: memref<16x1xi32, #tpu.memory_space<vmem>>, %arg5: memref<16x32xf32, #tpu.memory_space<vmem>>) attributes {dimension_semantics = [#tpu.dimension_semantics<parallel>], iteration_bounds = array<i64: 1>, scalar_prefetch = 0 : i64, scratch_operands = 0 : i64, tpu.core_type = #tpu.core_type<tc>, window_params = [{transform_indices = @transform_0, window_bounds = array<i64: 16, 32>}, {pipeline_mode = #tpu.pipeline_mode<synchronous>, transform_indices = @transform_1, window_bounds = array<i64: 4, 32>}, {pipeline_mode = #tpu.pipeline_mode<synchronous>, transform_indices = @transform_2, window_bounds = array<i64: 32, 4>}, {transform_indices = @transform_3, window_bounds = array<i64: 16, 1>}, {transform_indices = @transform_4, window_bounds = array<i64: 16, 32>}]} {
    %c0 = arith.constant 0 : index
    %c0_0 = arith.constant 0 : index
    %0 = vector.load %arg1[%c0, %c0_0] : memref<16x32xf32, #tpu.memory_space<vmem>>, vector<16x32xf32>
    %c0_1 = arith.constant 0 : index
    %c0_2 = arith.constant 0 : index
    %1 = vector.load %arg2[%c0_1, %c0_2] : memref<4x32xf32, #tpu.memory_space<vmem>>, vector<4x32xf32>
    %cst = arith.constant dense<0.000000e+00> : vector<16x4xf32>
    %2 = tpu.matmul %0, %1, %cst {dimension_numbers = #tpu.dot_dimension_numbers<[1], [1], [0], [0], [0, 0, 1, 0], [], []>} : vector<16x32xf32>, vector<4x32xf32>, vector<16x4xf32> -> vector<16x4xf32>
    %c0_3 = arith.constant 0 : index
    %c0_4 = arith.constant 0 : index
    %3 = vector.load %arg3[%c0_3, %c0_4] : memref<32x4xf32, #tpu.memory_space<vmem>>, vector<32x4xf32>
    %cst_5 = arith.constant dense<0.000000e+00> : vector<16x32xf32>
    %4 = tpu.matmul %2, %3, %cst_5 {dimension_numbers = #tpu.dot_dimension_numbers<[1], [1], [0], [0], [0, 0, 1, 0], [], []>} : vector<16x4xf32>, vector<32x4xf32>, vector<16x32xf32> -> vector<16x32xf32>
    %c0_6 = arith.constant 0 : index
    %c0_7 = arith.constant 0 : index
    %5 = vector.load %arg4[%c0_6, %c0_7] : memref<16x1xi32, #tpu.memory_space<vmem>>, vector<16x1xi32>
    %c0_i32 = arith.constant 0 : i32
    %6 = vector.broadcast %c0_i32 : i32 to vector<16x1xi32>
    %7 = arith.cmpi ne, %5, %6 : vector<16x1xi32>
    %8 = vector.shape_cast %7 : vector<16x1xi1> to vector<16x1xi1>
    %9 = vector.broadcast %8 : vector<16x1xi1> to vector<16x32xi1>
    %10 = arith.select %9, %4, %0 : vector<16x32xi1>, vector<16x32xf32>
    %c0_8 = arith.constant 0 : index
    %c0_9 = arith.constant 0 : index
    %11 = vector.load %arg5[%c0_8, %c0_9] : memref<16x32xf32, #tpu.memory_space<vmem>>, vector<16x32xf32>
    tpu.vector_store %arg5[%c0_8, %c0_9], %10 {strides = array<i32>} : memref<16x32xf32, #tpu.memory_space<vmem>>, vector<16x32xf32>,
    return
  }
  func.func @transform_0(%arg0: i32) -> (i32, i32) {
    %c0_i32 = arith.constant 0 : i32
    %c0_i32_0 = arith.constant 0 : i32
    return %arg0, %c0_i32 : i32, i32
  }
  func.func @transform_1(%arg0: i32) -> (i32, i32) {
    %c0_i32 = arith.constant 0 : i32
    %c0_i32_0 = arith.constant 0 : i32
    %c0_i32_1 = arith.constant 0 : i32
    return %c0_i32, %c0_i32_0 : i32, i32
  }
  func.func @transform_2(%arg0: i32) -> (i32, i32) {
    %c0_i32 = arith.constant 0 : i32
    %c0_i32_0 = arith.constant 0 : i32
    %c0_i32_1 = arith.constant 0 : i32
    return %c0_i32, %c0_i32_0 : i32, i32
  }
  func.func @transform_3(%arg0: i32) -> (i32, i32) {
    %c0_i32 = arith.constant 0 : i32
    %c0_i32_0 = arith.constant 0 : i32
    return %arg0, %c0_i32 : i32, i32
  }
  func.func @transform_4(%arg0: i32) -> (i32, i32) {
    %c0_i32 = arith.constant 0 : i32
    %c0_i32_0 = arith.constant 0 : i32
    return %arg0, %c0_i32 : i32, i32
  }
}

</mosaic_0001>

<llo_original>
// kernel: tpu_custom_call.1
$region0: #{tpu_custom_call.1}
  #allocation0 [shape = 'u32[]', space=smem, size = 0x4, offset = 0x4, fixed_abs, tag = 'smem constant byte address 0x4 - core index']
  #allocation1 [shape = 'u32[144,128]{1,0:T(1,128)}', space=vmem, size = 0x12000, scoped, tag = 'internal scratch']
  %s0 = inlined_call_operand.vmem [shape: f32[16,32], index: 0, kind: input, shape index: {}]
  %s1 = inlined_call_operand.vmem [shape: f32[4,32], index: 1, kind: input, shape index: {}]
  %s2 = inlined_call_operand.vmem [shape: f32[32,4], index: 2, kind: input, shape index: {}]
  %s3 = inlined_call_operand.vmem [shape: s32[16,1], index: 3, kind: input, shape index: {}]
  %s4 = inlined_call_operand.hbm [shape: f32[16,32], index: 4, kind: output, shape index: {}]
  %s5 = sld [smem:[#allocation0]]
  $region26: #{tpu_custom_call.1} parent=0
    _
  %s7 = ssub.s32 1, %s5
  %s8 = scalar_select 0, %s7, %s5
  $region1: #{tpu_custom_call.1} parent=0
    #allocation2 [shape = 'u8[8192]{0}', space=vmem, size = 0x2000, scoped, tag = 'output window, operand 0, single buffered']
    #allocation3 [shape = 's32[1]{0}', space=sflag, size = 0x4, scoped, tag = 'scoped memory for tpu_custom_call.1']
    %9 = vsyncpa [#allocation3], 0
    // Predicated region
    $region2: #{tpu_custom_call.1} parent=1 // pred_check
      _
    $region3: #{tpu_custom_call.1} parent=1 // pred_check_branch
      %11 = sbr.rel (0) target = $region5
    $region4: #{tpu_custom_call.1} parent=1 // pred_region
      _
    $region5: #{tpu_custom_call.1} parent=1 // pred_fallthru
      _
    // Predicated region
    $region6: #{tpu_custom_call.1} parent=1 // pred_check
      _
    $region7: #{tpu_custom_call.1} parent=1 // pred_check_branch
      %13 = sbr.rel (0) target = $region9
    $region8: #{tpu_custom_call.1} parent=1 // pred_region
      _
    $region9: #{tpu_custom_call.1} parent=1 // pred_fallthru
      _
    // Predicated region
    $region10: #{tpu_custom_call.1} parent=1 // pred_check
      _
    $region11: #{tpu_custom_call.1} parent=1 // pred_check_branch
      %15 = sbr.rel (0) target = $region13
    $region12: #{tpu_custom_call.1} parent=1 // pred_region
      _
    $region13: #{tpu_custom_call.1} parent=1 // pred_fallthru
      _
    // Predicated region
    $region14: #{tpu_custom_call.1} parent=1 // pred_check
      _
    $region15: #{tpu_custom_call.1} parent=1 // pred_check_branch
      %17 = sbr.rel (0) target = $region17
    $region16: #{tpu_custom_call.1} parent=1 // pred_region
      _
    $region17: #{tpu_custom_call.1} parent=1 // pred_fallthru
      _
    %v18 = vld [vmem:[%s0] sm:$0xff]
    %v19 = vld [vmem:[%s0 + $0x8] sm:$0xff]
    %v20 = vld [vmem:[%s1] sm:$0xf]
    %vm21 = vcmask 261120
    %v23 = vsel %vm21, %v18, 0
    %v26 = vsel %vm21, %v19, 0
    %v29 = vsel %vm21, %v20, 0
    %31 = vmatprep.subr.mxu0 0.0
    %32 = vmatpush1.xpose.msra.mxu0 %v29
    %33 = vmatprep.subr.mxu0 0.0
    %34 = vmatpush1.xpose.msra.mxu0 0.0
    %35 = vmatprep.subr.mxu0 0.0
    %36 = vmatpush1.xpose.msra.mxu0 0.0
    %37 = vmatprep.subr.mxu0 0.0
    %38 = vmatpush1.xpose.msra.mxu0 0.0
    %39 = vmatprep.subr.mxu0 0.0
    %40 = vmatpush1.xpose.msra.mxu0 0.0
    %41 = vmatprep.subr.mxu0 0.0
    %42 = vmatpush1.xpose.msra.mxu0 0.0
    %43 = vmatprep.subr.mxu0 0.0
    %44 = vmatpush1.xpose.msra.mxu0 0.0
    %45 = vmatprep.subr.mxu0 0.0
    %46 = vmatpush1.xpose.msra.mxu0 0.0
    %47 = vmatprep.subr.mxu0 0.0
    %48 = vmatpush1.xpose.msra.mxu0 0.0
    %49 = vmatprep.subr.mxu0 0.0
    %50 = vmatpush1.xpose.msra.mxu0 0.0
    %51 = vmatprep.subr.mxu0 0.0
    %52 = vmatpush1.xpose.msra.mxu0 0.0
    %53 = vmatprep.subr.mxu0 0.0
    %54 = vmatpush1.xpose.msra.mxu0 0.0
    %55 = vmatprep.subr.mxu0 0.0
    %56 = vmatpush1.xpose.msra.mxu0 0.0
    %57 = vmatprep.subr.mxu0 0.0
    %58 = vmatpush1.xpose.msra.mxu0 0.0
    %59 = vmatprep.subr.mxu0 0.0
    %60 = vmatpush1.xpose.msra.mxu0 0.0
    %61 = vmatprep.subr.mxu0 0.0
    %62 = vmatpush1.xpose.msra.mxu0 0.0
    %63 = vmatprep.subr.mxu0 0.0
    %64 = vmatpush1.xpose.msra.mxu0 0.0
    %65 = vmatprep.subr.mxu0 0.0
    %66 = vmatpush1.xpose.msra.mxu0 0.0
    %67 = vmatprep.subr.mxu0 0.0
    %68 = vmatpush1.xpose.msra.mxu0 0.0
    %69 = vmatprep.subr.mxu0 0.0
    %70 = vmatpush1.xpose.msra.mxu0 0.0
    %71 = vmatprep.subr.mxu0 0.0
    %72 = vmatpush1.xpose.msra.mxu0 0.0
    %73 = vmatprep.subr.mxu0 0.0
    %74 = vmatpush1.xpose.msra.mxu0 0.0
    %75 = vmatprep.subr.mxu0 0.0
    %76 = vmatpush1.xpose.msra.mxu0 0.0
    %77 = vmatprep.subr.mxu0 0.0
    %78 = vmatpush1.xpose.msra.mxu0 0.0
    %79 = vmatprep.subr.mxu0 0.0
    %80 = vmatpush1.xpose.msra.mxu0 0.0
    %81 = vmatprep.subr.mxu0 0.0
    %82 = vmatpush1.xpose.msra.mxu0 0.0
    %83 = vmatprep.subr.mxu0 0.0
    %84 = vmatpush1.xpose.msra.mxu0 0.0
    %85 = vmatprep.subr.mxu0 0.0
    %86 = vmatpush1.xpose.msra.mxu0 0.0
    %87 = vmatprep.subr.mxu0 0.0
    %88 = vmatpush1.xpose.msra.mxu0 0.0
    %89 = vmatprep.subr.mxu0 0.0
    %90 = vmatpush1.xpose.msra.mxu0 0.0
    %91 = vmatprep.subr.mxu0 0.0
    %92 = vmatpush1.xpose.msra.mxu0 0.0
    %93 = vmatprep.subr.mxu0 0.0
    %94 = vmatpush1.xpose.msra.mxu0 0.0
    %95 = vmatprep.mubr.f32.mxu0 0.0
    %96 = vmatmul.mubr.f32.gmra.mrb[0].mxu0 %v23
    %v97 = vpop.f32.mrb[0].mxu0
    %v98 = vadd.f32 0.0, %v97
    %v99 = vpop.f32.mrb[0].mxu0
    %100 = vmatprep.mubr.f32.mxu0 0.0
    %101 = vmatmul.mubr.f32.gmra.mrb[0].mxu0 %v26
    %v102 = vpop.f32.mrb[0].mxu0
    %v103 = vadd.f32 0.0, %v102
    %v104 = vpop.f32.mrb[0].mxu0
    %105 = vdwg.mxu0
    %v106 = vld [vmem:[%s2] sm:$0xff]
    %v107 = vld [vmem:[%s2 + $0x8] sm:$0xff]
    %v108 = vld [vmem:[%s2 + $0x10] sm:$0xff]
    %v109 = vld [vmem:[%s2 + $0x18] sm:$0xff]
    %vm110 = vcmask 31744
    %v112 = vsel %vm110, %v98, 0
    %v115 = vsel %vm110, %v103, 0
    %v118 = vsel %vm110, %v106, 0
    %v121 = vsel %vm110, %v107, 0
    %v124 = vsel %vm110, %v108, 0
    %v127 = vsel %vm110, %v109, 0
    %129 = vmatprep.subr.mxu0 0.0
    %130 = vmatpush1.xpose.msra.mxu0 %v118
    %131 = vmatprep.subr.mxu0 0.0
    %132 = vmatpush1.xpose.msra.mxu0 %v121
    %133 = vmatprep.subr.mxu0 0.0
    %134 = vmatpush1.xpose.msra.mxu0 %v124
    %135 = vmatprep.subr.mxu0 0.0
    %136 = vmatpush1.xpose.msra.mxu0 %v127
    %137 = vmatprep.subr.mxu0 0.0
    %138 = vmatpush1.xpose.msra.mxu0 0.0
    %139 = vmatprep.subr.mxu0 0.0
    %140 = vmatpush1.xpose.msra.mxu0 0.0
    %141 = vmatprep.subr.mxu0 0.0
    %142 = vmatpush1.xpose.msra.mxu0 0.0
    %143 = vmatprep.subr.mxu0 0.0
    %144 = vmatpush1.xpose.msra.mxu0 0.0
    %145 = vmatprep.subr.mxu0 0.0
    %146 = vmatpush1.xpose.msra.mxu0 0.0
    %147 = vmatprep.subr.mxu0 0.0
    %148 = vmatpush1.xpose.msra.mxu0 0.0
    %149 = vmatprep.subr.mxu0 0.0
    %150 = vmatpush1.xpose.msra.mxu0 0.0
    %151 = vmatprep.subr.mxu0 0.0
    %152 = vmatpush1.xpose.msra.mxu0 0.0
    %153 = vmatprep.subr.mxu0 0.0
    %154 = vmatpush1.xpose.msra.mxu0 0.0
    %155 = vmatprep.subr.mxu0 0.0
    %156 = vmatpush1.xpose.msra.mxu0 0.0
    %157 = vmatprep.subr.mxu0 0.0
    %158 = vmatpush1.xpose.msra.mxu0 0.0
    %159 = vmatprep.subr.mxu0 0.0
    %160 = vmatpush1.xpose.msra.mxu0 0.0
    %161 = vmatprep.subr.mxu0 0.0
    %162 = vmatpush1.xpose.msra.mxu0 0.0
    %163 = vmatprep.subr.mxu0 0.0
    %164 = vmatpush1.xpose.msra.mxu0 0.0
    %165 = vmatprep.subr.mxu0 0.0
    %166 = vmatpush1.xpose.msra.mxu0 0.0
    %167 = vmatprep.subr.mxu0 0.0
    %168 = vmatpush1.xpose.msra.mxu0 0.0
    %169 = vmatprep.subr.mxu0 0.0
    %170 = vmatpush1.xpose.msra.mxu0 0.0
    %171 = vmatprep.subr.mxu0 0.0
    %172 = vmatpush1.xpose.msra.mxu0 0.0
    %173 = vmatprep.subr.mxu0 0.0
    %174 = vmatpush1.xpose.msra.mxu0 0.0
    %175 = vmatprep.subr.mxu0 0.0
    %176 = vmatpush1.xpose.msra.mxu0 0.0
    %177 = vmatprep.subr.mxu0 0.0
    %178 = vmatpush1.xpose.msra.mxu0 0.0
    %179 = vmatprep.subr.mxu0 0.0
    %180 = vmatpush1.xpose.msra.mxu0 0.0
    %181 = vmatprep.subr.mxu0 0.0
    %182 = vmatpush1.xpose.msra.mxu0 0.0
    %183 = vmatprep.subr.mxu0 0.0
    %184 = vmatpush1.xpose.msra.mxu0 0.0
    %185 = vmatprep.subr.mxu0 0.0
    %186 = vmatpush1.xpose.msra.mxu0 0.0
    %187 = vmatprep.subr.mxu0 0.0
    %188 = vmatpush1.xpose.msra.mxu0 0.0
    %189 = vmatprep.subr.mxu0 0.0
    %190 = vmatpush1.xpose.msra.mxu0 0.0
    %191 = vmatprep.subr.mxu0 0.0
    %192 = vmatpush1.xpose.msra.mxu0 0.0
    %193 = vmatprep.mubr.f32.mxu0 0.0
    %194 = vmatmul.mubr.f32.gmra.mrb[0].mxu0 %v112
    %v195 = vpop.f32.mrb[0].mxu0
    %v196 = vadd.f32 0.0, %v195
    %v197 = vpop.f32.mrb[0].mxu0
    %198 = vmatprep.mubr.f32.mxu0 0.0
    %199 = vmatmul.mubr.f32.gmra.mrb[0].mxu0 %v115
    %v200 = vpop.f32.mrb[0].mxu0
    %v201 = vadd.f32 0.0, %v200
    %v202 = vpop.f32.mrb[0].mxu0
    %203 = vdwg.mxu0
    %v204 = vld [vmem:[%s3] sm:$0xff]
    %v205 = vld [vmem:[%s3 + $0x8] sm:$0xff]
    %vm206 = vcmp.ne.s32.totalorder %v204, 0
    %vm207 = vcmp.ne.s32.totalorder %v205, 0
    %v208 = vsel %vm206, 1, 0
    %v209 = vsel %vm207, 1, 0
    %210 = vset.pattern.permute.xlu0 0
    %211 = vperm.xlu0 %210, %v208
    %v212 = vpop.permute.xlu0 %211
    %213 = vset.pattern.permute.xlu0 0
    %214 = vperm.xlu0 %213, %v209
    %v215 = vpop.permute.xlu0 %214
    %vm216 = vcmp.eq.s32.totalorder %v212, 1
    %vm217 = vcmp.eq.s32.totalorder %v215, 1
    %v218 = vsel %vm216, %v196, %v18
    %v219 = vsel %vm217, %v201, %v19
    %220 = vst.msk [vmem:[#allocation2] sm:$0xff] %vm21, %v218
    %221 = vst.msk [vmem:[#allocation2 + $0x8] sm:$0xff] %vm21, %v219
    // Predicated region
    $region18: #{tpu_custom_call.1} parent=1 // pred_check
      _
    $region19: #{tpu_custom_call.1} parent=1 // pred_check_branch
      %223 = sbr.rel (0) target = $region21
    $region20: #{tpu_custom_call.1} parent=1 // pred_region
      %s225 = ssub.s32 256, 256
      %226 = vsyncadd [#allocation3], %s225
      %s227 = sshll.u32 [#allocation2], 4
      %s228 = int_to_ptr.vmem [resolvable:$true] %s227
      %233 = dma.vmem_to_hbm [thread:$0]  %s228, 256, %s4, [#allocation3], 128, 128, 8
    $region21: #{tpu_custom_call.1} parent=1 // pred_fallthru
      _
    // Predicated region
    $region22: #{tpu_custom_call.1} parent=1 // pred_check
      _
    $region23: #{tpu_custom_call.1} parent=1 // pred_check_branch
      %235 = sbr.rel (0) target = $region25
    $region24: #{tpu_custom_call.1} parent=1 // pred_region
      %236 = dma.done [#allocation3], 256
    $region25: #{tpu_custom_call.1} parent=1 // pred_fallthru
      _
    %237 = vsyncpa [#allocation3], 1

</llo_original>
